<compile_context>
chip_gen: v6e
topology: v6e:2x2x1
jax: 0.10.0
libtpu: 0.0.40
codegen_flags: <defaults>
</compile_context>

<pallas_src>
import math
import functools

import jax
import jax.numpy as jnp
from jax import lax
from jax.experimental import pallas as pl
from jax.experimental.pallas import tpu as pltpu


def _erf_approx(x):
    # Abramowitz & Stegun 7.1.26 (max abs err ~1.5e-7). The divide goes through the
    # EUP approximate reciprocal + one Newton step (off the VALU critical path).
    p = 0.3275911
    a1, a2, a3, a4, a5 = (0.254829592, -0.284496736, 1.421413741,
                          -1.453152027, 1.061405429)
    ax = jnp.abs(x)
    d = 1.0 + p * ax
    r = pl.reciprocal(d, approx=True)
    t = r * (2.0 - d * r)                       # Newton refinement
    poly = ((((a5 * t + a4) * t + a3) * t + a2) * t + a1) * t
    y = 1.0 - poly * jnp.exp(-ax * ax)
    return jnp.where(x >= 0, y, -y)


def _gelu_exact(x):
    # matches torch.nn.GELU() (approximate='none')
    return 0.5 * x * (1.0 + _erf_approx(x * (1.0 / math.sqrt(2.0))))


def _shift_lanes(x, k, hw):
    """out[:, q] = x[:, (q + k) % hw].  Wrapped lanes are always edge-masked by the
    caller, so the circular fill never reaches the result.  Implemented as two
    static lane slices + a lane concat (unambiguous semantics; lowers to XLU
    rotate/select work, which is otherwise idle here)."""
    s = k % hw
    if s == 0:
        return x
    return jnp.concatenate([x[:, s:], x[:, :s]], axis=1)


def _dsconv_kernel(x_ref, w_ref, b_ref, o_ref, *, cin, cout, h, w, ksize, bt):
    """One batch tile (bt images) per grid step.

    x_ref : (bt*cin, h*w)        VMEM  sublane-dense flattened images (row = b*cin+ci)
    w_ref : (cout, K*K*cin)      VMEM  depthwise+BN1+pointwise+BN2 folded weights
    b_ref : (cout, 1)            VMEM  folded bias
    o_ref : (bt, cout, h*w)      VMEM  output (lane-dense, unmasked stores)
    """
    hw = h * w
    pad = ksize // 2

    x = x_ref[...]                                           # (bt*cin, hw) f32

    # Edge masks from a lane iota (hoisted; no col_ids input, no halo scratch).
    pix = lax.broadcasted_iota(jnp.int32, (1, hw), 1)        # flat pixel index
    pcol = pix % w                                           # column within the row

    # Build the K*K shifted-and-masked taps once for the whole block.
    taps = []
    for oy in range(-pad, pad + 1):
        for ox in range(-pad, pad + 1):
            k = oy * w + ox
            tap = _shift_lanes(x, k, hw)
            if k != 0:
                valid = ((pix + oy * w >= 0) & (pix + oy * w < hw) &
                         (pcol + ox >= 0) & (pcol + ox < w))
                tap = jnp.where(valid, tap, 0.0)
            taps.append(tap)

    wmat = w_ref[...]                                        # (cout, K*K*cin)
    bias = b_ref[...]                                        # (cout, 1)

    # Per image: im2col rows (K*K*cin, hw) -> one MXU matmul -> bias -> GELU ->
    # one dense (cout, hw) store.  Static loop keeps vreg pressure tiny.
    for b in range(bt):
        tb = jnp.concatenate(
            [tap[b * cin:(b + 1) * cin, :] for tap in taps], axis=0)   # (K*K*cin, hw)
        z = jnp.dot(wmat, tb, preferred_element_type=jnp.float32) + bias
        o_ref[b] = _gelu_exact(z).astype(o_ref.dtype)


def _fold_params(params, *, cin, ksize):
    """Fold depthwise conv + BN1 + pointwise conv + BN2 (all linear, eval mode)
    into one (cout, K*K*cin) matrix and a (cout, 1) bias."""
    eps = 1e-5
    dw = params["dw"].astype(jnp.float32)                    # (cout, K, K)
    pw = params["pw"].astype(jnp.float32)                    # (cout, cout)
    cout = dw.shape[0]
    mult = cout // cin
    kk = ksize * ksize

    s1 = params["bn1_gamma"] / jnp.sqrt(params["bn1_var"] + eps)
    b1 = params["bn1_beta"] - params["bn1_mean"] * s1
    s2 = params["bn2_gamma"] / jnp.sqrt(params["bn2_var"] + eps)
    b2 = params["bn2_beta"] - params["bn2_mean"] * s2

    pw_fused = (s2[:, None] * pw) * s1[None, :]              # diag(s2) @ pw @ diag(s1)
    bias = (s2 * (pw @ b1) + b2)[:, None].astype(jnp.float32)            # (cout, 1)

    dw_flat = dw.reshape(cout, kk)                           # (cout, K*K)
    group = jnp.arange(cout, dtype=jnp.int32) // mult        # dw out-ch -> input ch
    onehot = (group[:, None] == jnp.arange(cin, dtype=jnp.int32)[None, :]
              ).astype(jnp.float32)                          # (cout, cin)
    # W_comb[o, t, ci] = sum_{c: c//mult==ci} pw_fused[o, c] * dw[c, t]
    w_comb = jnp.einsum("oc,ci,ct->oti", pw_fused, onehot, dw_flat)
    w_comb = w_comb.reshape(cout, kk * cin).astype(jnp.float32)   # row = t*cin + ci
    return w_comb, bias


def _pick_batch_tile(n, cin, cout, hw, kk, *, max_bt=16):
    """Choose the batch tile.  bt is a multiple of g = 8/gcd(cin,8) so the input
    block (bt*cin, hw) has dense sublanes; VMEM budget / grid-step policy adapt to
    the chip generation (conservative, fully accounted on 64 MiB/TC parts)."""
    g = 8 // math.gcd(cin, 8)
    try:
        info = pltpu.get_tpu_info()
        vmem_cap = int(getattr(info, "vmem_capacity_bytes", 0)) or (64 << 20)
    except Exception:                                        # no TPU / older API
        vmem_cap = 64 << 20
    small_vmem = vmem_cap <= (80 << 20)                      # v7x-like: 64 MiB / TC
    budget = (26 << 20) if small_vmem else (80 << 20)
    vmem_limit = (44 << 20) if small_vmem else (100 << 20)

    def vmem_bytes(bt):
        in_blk = bt * cin * hw * 4
        out_blk = bt * cout * hw * 4
        w_blk = cout * (cin * kk) * 4 + cout * 4
        # kk shifted/masked tap temporaries + one im2col concat temp; I/O + weight
        # blocks are double buffered, in-kernel temporaries are not.
        tmp = (kk + 1) * in_blk + (cin * kk) * hw * 4
        return 2 * (in_blk + out_blk + w_blk) + tmp + (2 << 20)

    if small_vmem and n >= 2 * g:
        # keep >= 2 grid steps so both v7x TensorCores get work
        max_bt = min(max_bt, (n // 2 // g) * g)

    best = g
    bt = g
    while bt <= max_bt:
        if vmem_bytes(bt) > budget:
            break
        best = bt
        if bt >= n:
            break
        bt += g
    return best, vmem_limit


def depthwise_separable_conv2d(x, params, *, ksize=3):
    """Forward pass equivalent to DepthwiseSeparableConv2d (stride=1, padding='same',
    eval-mode BatchNorm, exact GELU)."""
    n, cin, h, w = x.shape
    dw = params["dw"]
    cout = dw.shape[0]
    assert cout % cin == 0, "out_channels must be a multiple of in_channels"
    kk = ksize * ksize
    hw = h * w

    w_comb, bias = _fold_params(params, cin=cin, ksize=ksize)

    bt, vmem_limit = _pick_batch_tile(n, cin, cout, hw, kk)
    n_pad = ((n + bt - 1) // bt) * bt

    xf = x.reshape(n, cin, hw).astype(jnp.float32)
    if n_pad != n:                                           # pad batch, slice result
        xf = jnp.concatenate(
            [xf, jnp.zeros((n_pad - n, cin, hw), jnp.float32)], axis=0)
    xf2 = xf.reshape(n_pad * cin, hw)                        # sublane-dense rows

    kernel = functools.partial(_dsconv_kernel, cin=cin, cout=cout,
                               h=h, w=w, ksize=ksize, bt=bt)

    out = pl.pallas_call(
        kernel,
        out_shape=jax.ShapeDtypeStruct((n_pad, cout, hw), jnp.float32),
        grid=(n_pad // bt,),
        in_specs=[
            pl.BlockSpec((bt * cin, hw), lambda i: (i, 0)),       # images
            pl.BlockSpec((cout, cin * kk), lambda i: (0, 0)),     # folded weights
            pl.BlockSpec((cout, 1), lambda i: (0, 0)),            # folded bias
        ],
        out_specs=pl.BlockSpec((bt, cout, hw), lambda i: (i, 0, 0)),
        compiler_params=pltpu.CompilerParams(
            dimension_semantics=("parallel",),
            vmem_limit_bytes=vmem_limit,
        ),
    )(xf2, w_comb, bias)

    return out[:n].reshape(n, cout, h, w)


def _reference(x, params, *, ksize=3):
    """Pure-JAX reference mirroring the PyTorch module (eval-mode BN)."""
    eps = 1e-5
    cin = x.shape[1]
    dw = params["dw"][:, None, :, :]                 # (cout, 1, k, k) OIHW, grouped
    pw = params["pw"][:, :, None, None]              # (cout, cout, 1, 1)
    y = lax.conv_general_dilated(
        x, dw, window_strides=(1, 1), padding="SAME",
        dimension_numbers=("NCHW", "OIHW", "NCHW"), feature_group_count=cin)
    s1 = params["bn1_gamma"] / jnp.sqrt(params["bn1_var"] + eps)
    b1 = params["bn1_beta"] - params["bn1_mean"] * s1
    y = y * s1[None, :, None, None] + b1[None, :, None, None]
    y = lax.conv_general_dilated(
        y, pw, window_strides=(1, 1), padding="VALID",
        dimension_numbers=("NCHW", "OIHW", "NCHW"))
    s2 = params["bn2_gamma"] / jnp.sqrt(params["bn2_var"] + eps)
    b2 = params["bn2_beta"] - params["bn2_mean"] * s2
    y = y * s2[None, :, None, None] + b2[None, :, None, None]
    return jax.nn.gelu(y, approximate=False)


if __name__ == "__main__":
    N, Cin, H, W = 2, 4, 16, 16
    Cout = 8          # depthwise multiplier = Cout // Cin = 2 (groups = Cin)
    K = 3

    keys = jax.random.split(jax.random.PRNGKey(0), 11)
    x = jax.random.normal(keys[0], (N, Cin, H, W), jnp.float32)
    params = dict(
        dw=0.2 * jax.random.normal(keys[1], (Cout, K, K), jnp.float32),
        pw=0.2 * jax.random.normal(keys[2], (Cout, Cout), jnp.float32),
        bn1_gamma=1.0 + 0.1 * jax.random.normal(keys[3], (Cout,), jnp.float32),
        bn1_beta=0.05 * jax.random.normal(keys[4], (Cout,), jnp.float32),
        bn1_mean=0.1 * jax.random.normal(keys[5], (Cout,), jnp.float32),
        bn1_var=jnp.abs(1.0 + 0.1 * jax.random.normal(keys[6], (Cout,), jnp.float32)),
        bn2_gamma=1.0 + 0.1 * jax.random.normal(keys[7], (Cout,), jnp.float32),
        bn2_beta=0.05 * jax.random.normal(keys[8], (Cout,), jnp.float32),
        bn2_mean=0.1 * jax.random.normal(keys[9], (Cout,), jnp.float32),
        bn2_var=jnp.abs(1.0 + 0.1 * jax.random.normal(keys[10], (Cout,), jnp.float32)),
    )

    out = depthwise_separable_conv2d(x, params, ksize=K)
    out = jax.block_until_ready(out)

    ref = jax.block_until_ready(_reference(x, params, ksize=K))
    assert out.shape == (N, Cout, H, W)
    # 1e-3 tolerance: MXU f32 accumulation order / precision mode may differ slightly
    # from XLA's conv path; logic errors would be orders of magnitude larger.
    assert jnp.allclose(out, ref, atol=1e-3, rtol=1e-3), "mismatch vs JAX reference"

    print("KERNEL_OK")
</pallas_src>

<mosaic_0001>
module attributes {stable_mosaic.version = 11 : i64} {
  func.func @_dsconv_kernel(%arg0: i32, %arg1: memref<8x256xf32, #tpu.memory_space<vmem>>, %arg2: memref<8x36xf32, #tpu.memory_space<vmem>>, %arg3: memref<8x1xf32, #tpu.memory_space<vmem>>, %arg4: memref<2x8x256xf32, #tpu.memory_space<vmem>>) attributes {dimension_semantics = [#tpu.dimension_semantics<parallel>], iteration_bounds = array<i64: 1>, scalar_prefetch = 0 : i64, scratch_operands = 0 : i64, tpu.core_type = #tpu.core_type<tc>, window_params = [{transform_indices = @transform_0, window_bounds = array<i64: 8, 256>}, {pipeline_mode = #tpu.pipeline_mode<synchronous>, transform_indices = @transform_1, window_bounds = array<i64: 8, 36>}, {pipeline_mode = #tpu.pipeline_mode<synchronous>, transform_indices = @transform_2, window_bounds = array<i64: 8, 1>}, {transform_indices = @transform_3, window_bounds = array<i64: 2, 8, 256>}]} {
    %c0 = arith.constant 0 : index
    %c0_0 = arith.constant 0 : index
    %0 = vector.load %arg1[%c0, %c0_0] : memref<8x256xf32, #tpu.memory_space<vmem>>, vector<8x256xf32>
    %1 = tpu.iota {dimensions = array<i32: 1>} : vector<1x256xi32>
    %c16_i32 = arith.constant 16 : i32
    %c0_i32 = arith.constant 0 : i32
    %2 = arith.cmpi eq, %c16_i32, %c0_i32 : i32
    %c1_i32 = arith.constant 1 : i32
    %3 = arith.select %2, %c1_i32, %c16_i32 : i32
    %4 = vector.broadcast %3 : i32 to vector<1x256xi32>
    %5 = arith.remsi %1, %4 : vector<1x256xi32>
    %c0_i32_1 = arith.constant 0 : i32
    %6 = vector.broadcast %c0_i32_1 : i32 to vector<1x256xi32>
    %7 = arith.cmpi ne, %5, %6 : vector<1x256xi32>
    %c0_i32_2 = arith.constant 0 : i32
    %8 = vector.broadcast %c0_i32_2 : i32 to vector<1x256xi32>
    %9 = arith.cmpi slt, %5, %8 : vector<1x256xi32>
    %c0_i32_3 = arith.constant 0 : i32
    %10 = arith.cmpi slt, %3, %c0_i32_3 : i32
    %11 = vector.broadcast %10 : i1 to vector<1x256xi1>
    %12 = vector.broadcast %11 : vector<1x256xi1> to vector<1x256xi1>
    %13 = arith.xori %9, %12 : vector<1x256xi1>
    %14 = arith.andi %13, %7 : vector<1x256xi1>
    %15 = vector.broadcast %3 : i32 to vector<1x256xi32>
    %16 = arith.addi %5, %15 : vector<1x256xi32>
    %17 = arith.select %14, %16, %5 : vector<1x256xi1>, vector<1x256xi32>
    %18 = vector.extract_strided_slice %0 {offsets = [0, 239], sizes = [8, 17], strides = [1, 1]} : vector<8x256xf32> to vector<8x17xf32>
    %19 = vector.extract_strided_slice %0 {offsets = [0, 0], sizes = [8, 239], strides = [1, 1]} : vector<8x256xf32> to vector<8x239xf32>
    %20 = tpu.concatenate %18, %19 in 1 : vector<8x17xf32>, vector<8x239xf32> -> vector<8x256xf32>
    %c-16_i32 = arith.constant -16 : i32
    %21 = vector.broadcast %c-16_i32 : i32 to vector<1x256xi32>
    %22 = arith.addi %1, %21 : vector<1x256xi32>
    %c0_i32_4 = arith.constant 0 : i32
    %23 = vector.broadcast %c0_i32_4 : i32 to vector<1x256xi32>
    %24 = arith.cmpi sge, %22, %23 : vector<1x256xi32>
    %c-16_i32_5 = arith.constant -16 : i32
    %25 = vector.broadcast %c-16_i32_5 : i32 to vector<1x256xi32>
    %26 = arith.addi %1, %25 : vector<1x256xi32>
    %c256_i32 = arith.constant 256 : i32
    %27 = vector.broadcast %c256_i32 : i32 to vector<1x256xi32>
    %28 = arith.cmpi slt, %26, %27 : vector<1x256xi32>
    %29 = arith.andi %24, %28 : vector<1x256xi1>
    %c-1_i32 = arith.constant -1 : i32
    %30 = vector.broadcast %c-1_i32 : i32 to vector<1x256xi32>
    %31 = arith.addi %17, %30 : vector<1x256xi32>
    %c0_i32_6 = arith.constant 0 : i32
    %32 = vector.broadcast %c0_i32_6 : i32 to vector<1x256xi32>
    %33 = arith.cmpi sge, %31, %32 : vector<1x256xi32>
    %34 = arith.andi %29, %33 : vector<1x256xi1>
    %c-1_i32_7 = arith.constant -1 : i32
    %35 = vector.broadcast %c-1_i32_7 : i32 to vector<1x256xi32>
    %36 = arith.addi %17, %35 : vector<1x256xi32>
    %c16_i32_8 = arith.constant 16 : i32
    %37 = vector.broadcast %c16_i32_8 : i32 to vector<1x256xi32>
    %38 = arith.cmpi slt, %36, %37 : vector<1x256xi32>
    %39 = arith.andi %34, %38 : vector<1x256xi1>
    %cst = arith.constant 0.000000e+00 : f32
    %40 = vector.shape_cast %39 : vector<1x256xi1> to vector<1x256xi1>
    %41 = vector.broadcast %40 : vector<1x256xi1> to vector<8x256xi1>
    %42 = vector.broadcast %cst : f32 to vector<8x256xf32>
    %43 = arith.select %41, %20, %42 : vector<8x256xi1>, vector<8x256xf32>
    %44 = vector.extract_strided_slice %0 {offsets = [0, 240], sizes = [8, 16], strides = [1, 1]} : vector<8x256xf32> to vector<8x16xf32>
    %45 = vector.extract_strided_slice %0 {offsets = [0, 0], sizes = [8, 240], strides = [1, 1]} : vector<8x256xf32> to vector<8x240xf32>
    %46 = tpu.concatenate %44, %45 in 1 : vector<8x16xf32>, vector<8x240xf32> -> vector<8x256xf32>
    %c-16_i32_9 = arith.constant -16 : i32
    %47 = vector.broadcast %c-16_i32_9 : i32 to vector<1x256xi32>
    %48 = arith.addi %1, %47 : vector<1x256xi32>
    %c0_i32_10 = arith.constant 0 : i32
    %49 = vector.broadcast %c0_i32_10 : i32 to vector<1x256xi32>
    %50 = arith.cmpi sge, %48, %49 : vector<1x256xi32>
    %c-16_i32_11 = arith.constant -16 : i32
    %51 = vector.broadcast %c-16_i32_11 : i32 to vector<1x256xi32>
    %52 = arith.addi %1, %51 : vector<1x256xi32>
    %c256_i32_12 = arith.constant 256 : i32
    %53 = vector.broadcast %c256_i32_12 : i32 to vector<1x256xi32>
    %54 = arith.cmpi slt, %52, %53 : vector<1x256xi32>
    %55 = arith.andi %50, %54 : vector<1x256xi1>
    %c0_i32_13 = arith.constant 0 : i32
    %56 = vector.broadcast %c0_i32_13 : i32 to vector<1x256xi32>
    %57 = arith.addi %17, %56 : vector<1x256xi32>
    %c0_i32_14 = arith.constant 0 : i32
    %58 = vector.broadcast %c0_i32_14 : i32 to vector<1x256xi32>
    %59 = arith.cmpi sge, %57, %58 : vector<1x256xi32>
    %60 = arith.andi %55, %59 : vector<1x256xi1>
    %c0_i32_15 = arith.constant 0 : i32
    %61 = vector.broadcast %c0_i32_15 : i32 to vector<1x256xi32>
    %62 = arith.addi %17, %61 : vector<1x256xi32>
    %c16_i32_16 = arith.constant 16 : i32
    %63 = vector.broadcast %c16_i32_16 : i32 to vector<1x256xi32>
    %64 = arith.cmpi slt, %62, %63 : vector<1x256xi32>
    %65 = arith.andi %60, %64 : vector<1x256xi1>
    %cst_17 = arith.constant 0.000000e+00 : f32
    %66 = vector.shape_cast %65 : vector<1x256xi1> to vector<1x256xi1>
    %67 = vector.broadcast %66 : vector<1x256xi1> to vector<8x256xi1>
    %68 = vector.broadcast %cst_17 : f32 to vector<8x256xf32>
    %69 = arith.select %67, %46, %68 : vector<8x256xi1>, vector<8x256xf32>
    %70 = vector.extract_strided_slice %0 {offsets = [0, 241], sizes = [8, 15], strides = [1, 1]} : vector<8x256xf32> to vector<8x15xf32>
    %71 = vector.extract_strided_slice %0 {offsets = [0, 0], sizes = [8, 241], strides = [1, 1]} : vector<8x256xf32> to vector<8x241xf32>
    %72 = tpu.concatenate %70, %71 in 1 : vector<8x15xf32>, vector<8x241xf32> -> vector<8x256xf32>
    %c-16_i32_18 = arith.constant -16 : i32
    %73 = vector.broadcast %c-16_i32_18 : i32 to vector<1x256xi32>
    %74 = arith.addi %1, %73 : vector<1x256xi32>
    %c0_i32_19 = arith.constant 0 : i32
    %75 = vector.broadcast %c0_i32_19 : i32 to vector<1x256xi32>
    %76 = arith.cmpi sge, %74, %75 : vector<1x256xi32>
    %c-16_i32_20 = arith.constant -16 : i32
    %77 = vector.broadcast %c-16_i32_20 : i32 to vector<1x256xi32>
    %78 = arith.addi %1, %77 : vector<1x256xi32>
    %c256_i32_21 = arith.constant 256 : i32
    %79 = vector.broadcast %c256_i32_21 : i32 to vector<1x256xi32>
    %80 = arith.cmpi slt, %78, %79 : vector<1x256xi32>
    %81 = arith.andi %76, %80 : vector<1x256xi1>
    %c1_i32_22 = arith.constant 1 : i32
    %82 = vector.broadcast %c1_i32_22 : i32 to vector<1x256xi32>
    %83 = arith.addi %17, %82 : vector<1x256xi32>
    %c0_i32_23 = arith.constant 0 : i32
    %84 = vector.broadcast %c0_i32_23 : i32 to vector<1x256xi32>
    %85 = arith.cmpi sge, %83, %84 : vector<1x256xi32>
    %86 = arith.andi %81, %85 : vector<1x256xi1>
    %c1_i32_24 = arith.constant 1 : i32
    %87 = vector.broadcast %c1_i32_24 : i32 to vector<1x256xi32>
    %88 = arith.addi %17, %87 : vector<1x256xi32>
    %c16_i32_25 = arith.constant 16 : i32
    %89 = vector.broadcast %c16_i32_25 : i32 to vector<1x256xi32>
    %90 = arith.cmpi slt, %88, %89 : vector<1x256xi32>
    %91 = arith.andi %86, %90 : vector<1x256xi1>
    %cst_26 = arith.constant 0.000000e+00 : f32
    %92 = vector.shape_cast %91 : vector<1x256xi1> to vector<1x256xi1>
    %93 = vector.broadcast %92 : vector<1x256xi1> to vector<8x256xi1>
    %94 = vector.broadcast %cst_26 : f32 to vector<8x256xf32>
    %95 = arith.select %93, %72, %94 : vector<8x256xi1>, vector<8x256xf32>
    %96 = vector.extract_strided_slice %0 {offsets = [0, 255], sizes = [8, 1], strides = [1, 1]} : vector<8x256xf32> to vector<8x1xf32>
    %97 = vector.extract_strided_slice %0 {offsets = [0, 0], sizes = [8, 255], strides = [1, 1]} : vector<8x256xf32> to vector<8x255xf32>
    %98 = tpu.concatenate %96, %97 in 1 : vector<8x1xf32>, vector<8x255xf32> -> vector<8x256xf32>
    %c0_i32_27 = arith.constant 0 : i32
    %99 = vector.broadcast %c0_i32_27 : i32 to vector<1x256xi32>
    %100 = arith.addi %1, %99 : vector<1x256xi32>
    %c0_i32_28 = arith.constant 0 : i32
    %101 = vector.broadcast %c0_i32_28 : i32 to vector<1x256xi32>
    %102 = arith.cmpi sge, %100, %101 : vector<1x256xi32>
    %c0_i32_29 = arith.constant 0 : i32
    %103 = vector.broadcast %c0_i32_29 : i32 to vector<1x256xi32>
    %104 = arith.addi %1, %103 : vector<1x256xi32>
    %c256_i32_30 = arith.constant 256 : i32
    %105 = vector.broadcast %c256_i32_30 : i32 to vector<1x256xi32>
    %106 = arith.cmpi slt, %104, %105 : vector<1x256xi32>
    %107 = arith.andi %102, %106 : vector<1x256xi1>
    %c-1_i32_31 = arith.constant -1 : i32
    %108 = vector.broadcast %c-1_i32_31 : i32 to vector<1x256xi32>
    %109 = arith.addi %17, %108 : vector<1x256xi32>
    %c0_i32_32 = arith.constant 0 : i32
    %110 = vector.broadcast %c0_i32_32 : i32 to vector<1x256xi32>
    %111 = arith.cmpi sge, %109, %110 : vector<1x256xi32>
    %112 = arith.andi %107, %111 : vector<1x256xi1>
    %c-1_i32_33 = arith.constant -1 : i32
    %113 = vector.broadcast %c-1_i32_33 : i32 to vector<1x256xi32>
    %114 = arith.addi %17, %113 : vector<1x256xi32>
    %c16_i32_34 = arith.constant 16 : i32
    %115 = vector.broadcast %c16_i32_34 : i32 to vector<1x256xi32>
    %116 = arith.cmpi slt, %114, %115 : vector<1x256xi32>
    %117 = arith.andi %112, %116 : vector<1x256xi1>
    %cst_35 = arith.constant 0.000000e+00 : f32
    %118 = vector.shape_cast %117 : vector<1x256xi1> to vector<1x256xi1>
    %119 = vector.broadcast %118 : vector<1x256xi1> to vector<8x256xi1>
    %120 = vector.broadcast %cst_35 : f32 to vector<8x256xf32>
    %121 = arith.select %119, %98, %120 : vector<8x256xi1>, vector<8x256xf32>
    %122 = vector.extract_strided_slice %0 {offsets = [0, 1], sizes = [8, 255], strides = [1, 1]} : vector<8x256xf32> to vector<8x255xf32>
    %123 = vector.extract_strided_slice %0 {offsets = [0, 0], sizes = [8, 1], strides = [1, 1]} : vector<8x256xf32> to vector<8x1xf32>
    %124 = tpu.concatenate %122, %123 in 1 : vector<8x255xf32>, vector<8x1xf32> -> vector<8x256xf32>
    %c0_i32_36 = arith.constant 0 : i32
    %125 = vector.broadcast %c0_i32_36 : i32 to vector<1x256xi32>
    %126 = arith.addi %1, %125 : vector<1x256xi32>
    %c0_i32_37 = arith.constant 0 : i32
    %127 = vector.broadcast %c0_i32_37 : i32 to vector<1x256xi32>
    %128 = arith.cmpi sge, %126, %127 : vector<1x256xi32>
    %c0_i32_38 = arith.constant 0 : i32
    %129 = vector.broadcast %c0_i32_38 : i32 to vector<1x256xi32>
    %130 = arith.addi %1, %129 : vector<1x256xi32>
    %c256_i32_39 = arith.constant 256 : i32
    %131 = vector.broadcast %c256_i32_39 : i32 to vector<1x256xi32>
    %132 = arith.cmpi slt, %130, %131 : vector<1x256xi32>
    %133 = arith.andi %128, %132 : vector<1x256xi1>
    %c1_i32_40 = arith.constant 1 : i32
    %134 = vector.broadcast %c1_i32_40 : i32 to vector<1x256xi32>
    %135 = arith.addi %17, %134 : vector<1x256xi32>
    %c0_i32_41 = arith.constant 0 : i32
    %136 = vector.broadcast %c0_i32_41 : i32 to vector<1x256xi32>
    %137 = arith.cmpi sge, %135, %136 : vector<1x256xi32>
    %138 = arith.andi %133, %137 : vector<1x256xi1>
    %c1_i32_42 = arith.constant 1 : i32
    %139 = vector.broadcast %c1_i32_42 : i32 to vector<1x256xi32>
    %140 = arith.addi %17, %139 : vector<1x256xi32>
    %c16_i32_43 = arith.constant 16 : i32
    %141 = vector.broadcast %c16_i32_43 : i32 to vector<1x256xi32>
    %142 = arith.cmpi slt, %140, %141 : vector<1x256xi32>
    %143 = arith.andi %138, %142 : vector<1x256xi1>
    %cst_44 = arith.constant 0.000000e+00 : f32
    %144 = vector.shape_cast %143 : vector<1x256xi1> to vector<1x256xi1>
    %145 = vector.broadcast %144 : vector<1x256xi1> to vector<8x256xi1>
    %146 = vector.broadcast %cst_44 : f32 to vector<8x256xf32>
    %147 = arith.select %145, %124, %146 : vector<8x256xi1>, vector<8x256xf32>
    %148 = vector.extract_strided_slice %0 {offsets = [0, 15], sizes = [8, 241], strides = [1, 1]} : vector<8x256xf32> to vector<8x241xf32>
    %149 = vector.extract_strided_slice %0 {offsets = [0, 0], sizes = [8, 15], strides = [1, 1]} : vector<8x256xf32> to vector<8x15xf32>
    %150 = tpu.concatenate %148, %149 in 1 : vector<8x241xf32>, vector<8x15xf32> -> vector<8x256xf32>
    %c16_i32_45 = arith.constant 16 : i32
    %151 = vector.broadcast %c16_i32_45 : i32 to vector<1x256xi32>
    %152 = arith.addi %1, %151 : vector<1x256xi32>
    %c0_i32_46 = arith.constant 0 : i32
    %153 = vector.broadcast %c0_i32_46 : i32 to vector<1x256xi32>
    %154 = arith.cmpi sge, %152, %153 : vector<1x256xi32>
    %c16_i32_47 = arith.constant 16 : i32
    %155 = vector.broadcast %c16_i32_47 : i32 to vector<1x256xi32>
    %156 = arith.addi %1, %155 : vector<1x256xi32>
    %c256_i32_48 = arith.constant 256 : i32
    %157 = vector.broadcast %c256_i32_48 : i32 to vector<1x256xi32>
    %158 = arith.cmpi slt, %156, %157 : vector<1x256xi32>
    %159 = arith.andi %154, %158 : vector<1x256xi1>
    %c-1_i32_49 = arith.constant -1 : i32
    %160 = vector.broadcast %c-1_i32_49 : i32 to vector<1x256xi32>
    %161 = arith.addi %17, %160 : vector<1x256xi32>
    %c0_i32_50 = arith.constant 0 : i32
    %162 = vector.broadcast %c0_i32_50 : i32 to vector<1x256xi32>
    %163 = arith.cmpi sge, %161, %162 : vector<1x256xi32>
    %164 = arith.andi %159, %163 : vector<1x256xi1>
    %c-1_i32_51 = arith.constant -1 : i32
    %165 = vector.broadcast %c-1_i32_51 : i32 to vector<1x256xi32>
    %166 = arith.addi %17, %165 : vector<1x256xi32>
    %c16_i32_52 = arith.constant 16 : i32
    %167 = vector.broadcast %c16_i32_52 : i32 to vector<1x256xi32>
    %168 = arith.cmpi slt, %166, %167 : vector<1x256xi32>
    %169 = arith.andi %164, %168 : vector<1x256xi1>
    %cst_53 = arith.constant 0.000000e+00 : f32
    %170 = vector.shape_cast %169 : vector<1x256xi1> to vector<1x256xi1>
    %171 = vector.broadcast %170 : vector<1x256xi1> to vector<8x256xi1>
    %172 = vector.broadcast %cst_53 : f32 to vector<8x256xf32>
    %173 = arith.select %171, %150, %172 : vector<8x256xi1>, vector<8x256xf32>
    %174 = vector.extract_strided_slice %0 {offsets = [0, 16], sizes = [8, 240], strides = [1, 1]} : vector<8x256xf32> to vector<8x240xf32>
    %175 = vector.extract_strided_slice %0 {offsets = [0, 0], sizes = [8, 16], strides = [1, 1]} : vector<8x256xf32> to vector<8x16xf32>
    %176 = tpu.concatenate %174, %175 in 1 : vector<8x240xf32>, vector<8x16xf32> -> vector<8x256xf32>
    %c16_i32_54 = arith.constant 16 : i32
    %177 = vector.broadcast %c16_i32_54 : i32 to vector<1x256xi32>
    %178 = arith.addi %1, %177 : vector<1x256xi32>
    %c0_i32_55 = arith.constant 0 : i32
    %179 = vector.broadcast %c0_i32_55 : i32 to vector<1x256xi32>
    %180 = arith.cmpi sge, %178, %179 : vector<1x256xi32>
    %c16_i32_56 = arith.constant 16 : i32
    %181 = vector.broadcast %c16_i32_56 : i32 to vector<1x256xi32>
    %182 = arith.addi %1, %181 : vector<1x256xi32>
    %c256_i32_57 = arith.constant 256 : i32
    %183 = vector.broadcast %c256_i32_57 : i32 to vector<1x256xi32>
    %184 = arith.cmpi slt, %182, %183 : vector<1x256xi32>
    %185 = arith.andi %180, %184 : vector<1x256xi1>
    %c0_i32_58 = arith.constant 0 : i32
    %186 = vector.broadcast %c0_i32_58 : i32 to vector<1x256xi32>
    %187 = arith.addi %17, %186 : vector<1x256xi32>
    %c0_i32_59 = arith.constant 0 : i32
    %188 = vector.broadcast %c0_i32_59 : i32 to vector<1x256xi32>
    %189 = arith.cmpi sge, %187, %188 : vector<1x256xi32>
    %190 = arith.andi %185, %189 : vector<1x256xi1>
    %c0_i32_60 = arith.constant 0 : i32
    %191 = vector.broadcast %c0_i32_60 : i32 to vector<1x256xi32>
    %192 = arith.addi %17, %191 : vector<1x256xi32>
    %c16_i32_61 = arith.constant 16 : i32
    %193 = vector.broadcast %c16_i32_61 : i32 to vector<1x256xi32>
    %194 = arith.cmpi slt, %192, %193 : vector<1x256xi32>
    %195 = arith.andi %190, %194 : vector<1x256xi1>
    %cst_62 = arith.constant 0.000000e+00 : f32
    %196 = vector.shape_cast %195 : vector<1x256xi1> to vector<1x256xi1>
    %197 = vector.broadcast %196 : vector<1x256xi1> to vector<8x256xi1>
    %198 = vector.broadcast %cst_62 : f32 to vector<8x256xf32>
    %199 = arith.select %197, %176, %198 : vector<8x256xi1>, vector<8x256xf32>
    %200 = vector.extract_strided_slice %0 {offsets = [0, 17], sizes = [8, 239], strides = [1, 1]} : vector<8x256xf32> to vector<8x239xf32>
    %201 = vector.extract_strided_slice %0 {offsets = [0, 0], sizes = [8, 17], strides = [1, 1]} : vector<8x256xf32> to vector<8x17xf32>
    %202 = tpu.concatenate %200, %201 in 1 : vector<8x239xf32>, vector<8x17xf32> -> vector<8x256xf32>
    %c16_i32_63 = arith.constant 16 : i32
    %203 = vector.broadcast %c16_i32_63 : i32 to vector<1x256xi32>
    %204 = arith.addi %1, %203 : vector<1x256xi32>
    %c0_i32_64 = arith.constant 0 : i32
    %205 = vector.broadcast %c0_i32_64 : i32 to vector<1x256xi32>
    %206 = arith.cmpi sge, %204, %205 : vector<1x256xi32>
    %c16_i32_65 = arith.constant 16 : i32
    %207 = vector.broadcast %c16_i32_65 : i32 to vector<1x256xi32>
    %208 = arith.addi %1, %207 : vector<1x256xi32>
    %c256_i32_66 = arith.constant 256 : i32
    %209 = vector.broadcast %c256_i32_66 : i32 to vector<1x256xi32>
    %210 = arith.cmpi slt, %208, %209 : vector<1x256xi32>
    %211 = arith.andi %206, %210 : vector<1x256xi1>
    %c1_i32_67 = arith.constant 1 : i32
    %212 = vector.broadcast %c1_i32_67 : i32 to vector<1x256xi32>
    %213 = arith.addi %17, %212 : vector<1x256xi32>
    %c0_i32_68 = arith.constant 0 : i32
    %214 = vector.broadcast %c0_i32_68 : i32 to vector<1x256xi32>
    %215 = arith.cmpi sge, %213, %214 : vector<1x256xi32>
    %216 = arith.andi %211, %215 : vector<1x256xi1>
    %c1_i32_69 = arith.constant 1 : i32
    %217 = vector.broadcast %c1_i32_69 : i32 to vector<1x256xi32>
    %218 = arith.addi %17, %217 : vector<1x256xi32>
    %c16_i32_70 = arith.constant 16 : i32
    %219 = vector.broadcast %c16_i32_70 : i32 to vector<1x256xi32>
    %220 = arith.cmpi slt, %218, %219 : vector<1x256xi32>
    %221 = arith.andi %216, %220 : vector<1x256xi1>
    %cst_71 = arith.constant 0.000000e+00 : f32
    %222 = vector.shape_cast %221 : vector<1x256xi1> to vector<1x256xi1>
    %223 = vector.broadcast %222 : vector<1x256xi1> to vector<8x256xi1>
    %224 = vector.broadcast %cst_71 : f32 to vector<8x256xf32>
    %225 = arith.select %223, %202, %224 : vector<8x256xi1>, vector<8x256xf32>
    %c0_72 = arith.constant 0 : index
    %c0_73 = arith.constant 0 : index
    %226 = vector.load %arg2[%c0_72, %c0_73] : memref<8x36xf32, #tpu.memory_space<vmem>>, vector<8x36xf32>
    %c0_74 = arith.constant 0 : index
    %c0_75 = arith.constant 0 : index
    %227 = vector.load %arg3[%c0_74, %c0_75] : memref<8x1xf32, #tpu.memory_space<vmem>>, vector<8x1xf32>
    %228 = vector.extract_strided_slice %43 {offsets = [0, 0], sizes = [4, 256], strides = [1, 1]} : vector<8x256xf32> to vector<4x256xf32>
    %229 = vector.extract_strided_slice %69 {offsets = [0, 0], sizes = [4, 256], strides = [1, 1]} : vector<8x256xf32> to vector<4x256xf32>
    %230 = vector.extract_strided_slice %95 {offsets = [0, 0], sizes = [4, 256], strides = [1, 1]} : vector<8x256xf32> to vector<4x256xf32>
    %231 = vector.extract_strided_slice %121 {offsets = [0, 0], sizes = [4, 256], strides = [1, 1]} : vector<8x256xf32> to vector<4x256xf32>
    %232 = vector.extract_strided_slice %0 {offsets = [0, 0], sizes = [4, 256], strides = [1, 1]} : vector<8x256xf32> to vector<4x256xf32>
    %233 = vector.extract_strided_slice %147 {offsets = [0, 0], sizes = [4, 256], strides = [1, 1]} : vector<8x256xf32> to vector<4x256xf32>
    %234 = vector.extract_strided_slice %173 {offsets = [0, 0], sizes = [4, 256], strides = [1, 1]} : vector<8x256xf32> to vector<4x256xf32>
    %235 = vector.extract_strided_slice %199 {offsets = [0, 0], sizes = [4, 256], strides = [1, 1]} : vector<8x256xf32> to vector<4x256xf32>
    %236 = vector.extract_strided_slice %225 {offsets = [0, 0], sizes = [4, 256], strides = [1, 1]} : vector<8x256xf32> to vector<4x256xf32>
    %237 = tpu.concatenate %228, %229, %230, %231, %232, %233, %234, %235, %236 in 0 : vector<4x256xf32>, vector<4x256xf32>, vector<4x256xf32>, vector<4x256xf32>, vector<4x256xf32>, vector<4x256xf32>, vector<4x256xf32>, vector<4x256xf32>, vector<4x256xf32> -> vector<36x256xf32>
    %cst_76 = arith.constant dense<0.000000e+00> : vector<8x256xf32>
    %238 = tpu.matmul %226, %237, %cst_76 {dimension_numbers = #tpu.dot_dimension_numbers<[1], [0], [0], [1], [0, 0, 1, 1], [], []>} : vector<8x36xf32>, vector<36x256xf32>, vector<8x256xf32> -> vector<8x256xf32>
    %239 = vector.broadcast %227 : vector<8x1xf32> to vector<8x256xf32>
    %240 = arith.addf %238, %239 : vector<8x256xf32>
    %cst_77 = arith.constant 5.000000e-01 : f32
    %241 = vector.broadcast %cst_77 : f32 to vector<8x256xf32>
    %242 = arith.mulf %241, %240 : vector<8x256xf32>
    %cst_78 = arith.constant 0.707106769 : f32
    %243 = vector.broadcast %cst_78 : f32 to vector<8x256xf32>
    %244 = arith.mulf %240, %243 : vector<8x256xf32>
    %245 = math.absf %244 : vector<8x256xf32>
    %cst_79 = arith.constant 0.327591091 : f32
    %246 = vector.broadcast %cst_79 : f32 to vector<8x256xf32>
    %247 = arith.mulf %246, %245 : vector<8x256xf32>
    %cst_80 = arith.constant 1.000000e+00 : f32
    %248 = vector.broadcast %cst_80 : f32 to vector<8x256xf32>
    %249 = arith.addf %248, %247 : vector<8x256xf32>
    %250 = tpu.reciprocal %249 {approx = true} : vector<8x256xf32> -> vector<8x256xf32>
    %251 = arith.mulf %249, %250 : vector<8x256xf32>
    %cst_81 = arith.constant 2.000000e+00 : f32
    %252 = vector.broadcast %cst_81 : f32 to vector<8x256xf32>
    %253 = arith.subf %252, %251 : vector<8x256xf32>
    %254 = arith.mulf %250, %253 : vector<8x256xf32>
    %cst_82 = arith.constant 1.06140542 : f32
    %255 = vector.broadcast %cst_82 : f32 to vector<8x256xf32>
    %256 = arith.mulf %255, %254 : vector<8x256xf32>
    %cst_83 = arith.constant -1.45315206 : f32
    %257 = vector.broadcast %cst_83 : f32 to vector<8x256xf32>
    %258 = arith.addf %256, %257 : vector<8x256xf32>
    %259 = arith.mulf %258, %254 : vector<8x256xf32>
    %cst_84 = arith.constant 1.42141378 : f32
    %260 = vector.broadcast %cst_84 : f32 to vector<8x256xf32>
    %261 = arith.addf %259, %260 : vector<8x256xf32>
    %262 = arith.mulf %261, %254 : vector<8x256xf32>
    %cst_85 = arith.constant -0.284496725 : f32
    %263 = vector.broadcast %cst_85 : f32 to vector<8x256xf32>
    %264 = arith.addf %262, %263 : vector<8x256xf32>
    %265 = arith.mulf %264, %254 : vector<8x256xf32>
    %cst_86 = arith.constant 0.254829586 : f32
    %266 = vector.broadcast %cst_86 : f32 to vector<8x256xf32>
    %267 = arith.addf %265, %266 : vector<8x256xf32>
    %268 = arith.mulf %267, %254 : vector<8x256xf32>
    %cst_87 = arith.constant 0.000000e+00 : f32
    %269 = vector.broadcast %cst_87 : f32 to vector<8x256xf32>
    %270 = arith.subf %269, %245 : vector<8x256xf32>
    %271 = arith.mulf %270, %245 : vector<8x256xf32>
    %272 = math.exp %271 : vector<8x256xf32>
    %273 = arith.mulf %268, %272 : vector<8x256xf32>
    %cst_88 = arith.constant 1.000000e+00 : f32
    %274 = vector.broadcast %cst_88 : f32 to vector<8x256xf32>
    %275 = arith.subf %274, %273 : vector<8x256xf32>
    %cst_89 = arith.constant 0.000000e+00 : f32
    %276 = vector.broadcast %cst_89 : f32 to vector<8x256xf32>
    %277 = arith.cmpf oge, %244, %276 : vector<8x256xf32>
    %cst_90 = arith.constant 0.000000e+00 : f32
    %278 = vector.broadcast %cst_90 : f32 to vector<8x256xf32>
    %279 = arith.subf %278, %275 : vector<8x256xf32>
    %280 = arith.select %277, %275, %279 : vector<8x256xi1>, vector<8x256xf32>
    %cst_91 = arith.constant 1.000000e+00 : f32
    %281 = vector.broadcast %cst_91 : f32 to vector<8x256xf32>
    %282 = arith.addf %281, %280 : vector<8x256xf32>
    %283 = arith.mulf %242, %282 : vector<8x256xf32>
    %c0_92 = arith.constant 0 : index
    %c0_93 = arith.constant 0 : index
    %c0_94 = arith.constant 0 : index
    %284 = vector.load %arg4[%c0_92, %c0_93, %c0_94] : memref<2x8x256xf32, #tpu.memory_space<vmem>>, vector<1x8x256xf32>
    %285 = vector.shape_cast %284 : vector<1x8x256xf32> to vector<8x256xf32>
    %286 = vector.shape_cast %283 : vector<8x256xf32> to vector<1x8x256xf32>
    tpu.vector_store %arg4[%c0_92, %c0_93, %c0_94], %286 {strides = array<i32>} : memref<2x8x256xf32, #tpu.memory_space<vmem>>, vector<1x8x256xf32>,
    %287 = vector.extract_strided_slice %43 {offsets = [4, 0], sizes = [4, 256], strides = [1, 1]} : vector<8x256xf32> to vector<4x256xf32>
    %288 = vector.extract_strided_slice %69 {offsets = [4, 0], sizes = [4, 256], strides = [1, 1]} : vector<8x256xf32> to vector<4x256xf32>
    %289 = vector.extract_strided_slice %95 {offsets = [4, 0], sizes = [4, 256], strides = [1, 1]} : vector<8x256xf32> to vector<4x256xf32>
    %290 = vector.extract_strided_slice %121 {offsets = [4, 0], sizes = [4, 256], strides = [1, 1]} : vector<8x256xf32> to vector<4x256xf32>
    %291 = vector.extract_strided_slice %0 {offsets = [4, 0], sizes = [4, 256], strides = [1, 1]} : vector<8x256xf32> to vector<4x256xf32>
    %292 = vector.extract_strided_slice %147 {offsets = [4, 0], sizes = [4, 256], strides = [1, 1]} : vector<8x256xf32> to vector<4x256xf32>
    %293 = vector.extract_strided_slice %173 {offsets = [4, 0], sizes = [4, 256], strides = [1, 1]} : vector<8x256xf32> to vector<4x256xf32>
    %294 = vector.extract_strided_slice %199 {offsets = [4, 0], sizes = [4, 256], strides = [1, 1]} : vector<8x256xf32> to vector<4x256xf32>
    %295 = vector.extract_strided_slice %225 {offsets = [4, 0], sizes = [4, 256], strides = [1, 1]} : vector<8x256xf32> to vector<4x256xf32>
    %296 = tpu.concatenate %287, %288, %289, %290, %291, %292, %293, %294, %295 in 0 : vector<4x256xf32>, vector<4x256xf32>, vector<4x256xf32>, vector<4x256xf32>, vector<4x256xf32>, vector<4x256xf32>, vector<4x256xf32>, vector<4x256xf32>, vector<4x256xf32> -> vector<36x256xf32>
    %cst_95 = arith.constant dense<0.000000e+00> : vector<8x256xf32>
    %297 = tpu.matmul %226, %296, %cst_95 {dimension_numbers = #tpu.dot_dimension_numbers<[1], [0], [0], [1], [0, 0, 1, 1], [], []>} : vector<8x36xf32>, vector<36x256xf32>, vector<8x256xf32> -> vector<8x256xf32>
    %298 = vector.broadcast %227 : vector<8x1xf32> to vector<8x256xf32>
    %299 = arith.addf %297, %298 : vector<8x256xf32>
    %cst_96 = arith.constant 5.000000e-01 : f32
    %300 = vector.broadcast %cst_96 : f32 to vector<8x256xf32>
    %301 = arith.mulf %300, %299 : vector<8x256xf32>
    %cst_97 = arith.constant 0.707106769 : f32
    %302 = vector.broadcast %cst_97 : f32 to vector<8x256xf32>
    %303 = arith.mulf %299, %302 : vector<8x256xf32>
    %304 = math.absf %303 : vector<8x256xf32>
    %cst_98 = arith.constant 0.327591091 : f32
    %305 = vector.broadcast %cst_98 : f32 to vector<8x256xf32>
    %306 = arith.mulf %305, %304 : vector<8x256xf32>
    %cst_99 = arith.constant 1.000000e+00 : f32
    %307 = vector.broadcast %cst_99 : f32 to vector<8x256xf32>
    %308 = arith.addf %307, %306 : vector<8x256xf32>
    %309 = tpu.reciprocal %308 {approx = true} : vector<8x256xf32> -> vector<8x256xf32>
    %310 = arith.mulf %308, %309 : vector<8x256xf32>
    %cst_100 = arith.constant 2.000000e+00 : f32
    %311 = vector.broadcast %cst_100 : f32 to vector<8x256xf32>
    %312 = arith.subf %311, %310 : vector<8x256xf32>
    %313 = arith.mulf %309, %312 : vector<8x256xf32>
    %cst_101 = arith.constant 1.06140542 : f32
    %314 = vector.broadcast %cst_101 : f32 to vector<8x256xf32>
    %315 = arith.mulf %314, %313 : vector<8x256xf32>
    %cst_102 = arith.constant -1.45315206 : f32
    %316 = vector.broadcast %cst_102 : f32 to vector<8x256xf32>
    %317 = arith.addf %315, %316 : vector<8x256xf32>
    %318 = arith.mulf %317, %313 : vector<8x256xf32>
    %cst_103 = arith.constant 1.42141378 : f32
    %319 = vector.broadcast %cst_103 : f32 to vector<8x256xf32>
    %320 = arith.addf %318, %319 : vector<8x256xf32>
    %321 = arith.mulf %320, %313 : vector<8x256xf32>
    %cst_104 = arith.constant -0.284496725 : f32
    %322 = vector.broadcast %cst_104 : f32 to vector<8x256xf32>
    %323 = arith.addf %321, %322 : vector<8x256xf32>
    %324 = arith.mulf %323, %313 : vector<8x256xf32>
    %cst_105 = arith.constant 0.254829586 : f32
    %325 = vector.broadcast %cst_105 : f32 to vector<8x256xf32>
    %326 = arith.addf %324, %325 : vector<8x256xf32>
    %327 = arith.mulf %326, %313 : vector<8x256xf32>
    %cst_106 = arith.constant 0.000000e+00 : f32
    %328 = vector.broadcast %cst_106 : f32 to vector<8x256xf32>
    %329 = arith.subf %328, %304 : vector<8x256xf32>
    %330 = arith.mulf %329, %304 : vector<8x256xf32>
    %331 = math.exp %330 : vector<8x256xf32>
    %332 = arith.mulf %327, %331 : vector<8x256xf32>
    %cst_107 = arith.constant 1.000000e+00 : f32
    %333 = vector.broadcast %cst_107 : f32 to vector<8x256xf32>
    %334 = arith.subf %333, %332 : vector<8x256xf32>
    %cst_108 = arith.constant 0.000000e+00 : f32
    %335 = vector.broadcast %cst_108 : f32 to vector<8x256xf32>
    %336 = arith.cmpf oge, %303, %335 : vector<8x256xf32>
    %cst_109 = arith.constant 0.000000e+00 : f32
    %337 = vector.broadcast %cst_109 : f32 to vector<8x256xf32>
    %338 = arith.subf %337, %334 : vector<8x256xf32>
    %339 = arith.select %336, %334, %338 : vector<8x256xi1>, vector<8x256xf32>
    %cst_110 = arith.constant 1.000000e+00 : f32
    %340 = vector.broadcast %cst_110 : f32 to vector<8x256xf32>
    %341 = arith.addf %340, %339 : vector<8x256xf32>
    %342 = arith.mulf %301, %341 : vector<8x256xf32>
    %c1 = arith.constant 1 : index
    %c0_111 = arith.constant 0 : index
    %c0_112 = arith.constant 0 : index
    %343 = vector.load %arg4[%c1, %c0_111, %c0_112] : memref<2x8x256xf32, #tpu.memory_space<vmem>>, vector<1x8x256xf32>
    %344 = vector.shape_cast %343 : vector<1x8x256xf32> to vector<8x256xf32>
    %345 = vector.shape_cast %342 : vector<8x256xf32> to vector<1x8x256xf32>
    tpu.vector_store %arg4[%c1, %c0_111, %c0_112], %345 {strides = array<i32>} : memref<2x8x256xf32, #tpu.memory_space<vmem>>, vector<1x8x256xf32>,
    return
  }
  func.func @transform_0(%arg0: i32) -> (i32, i32) {
    %c0_i32 = arith.constant 0 : i32
    %c0_i32_0 = arith.constant 0 : i32
    return %arg0, %c0_i32 : i32, i32
  }
  func.func @transform_1(%arg0: i32) -> (i32, i32) {
    %c0_i32 = arith.constant 0 : i32
    %c0_i32_0 = arith.constant 0 : i32
    %c0_i32_1 = arith.constant 0 : i32
    return %c0_i32, %c0_i32_0 : i32, i32
  }
  func.func @transform_2(%arg0: i32) -> (i32, i32) {
    %c0_i32 = arith.constant 0 : i32
    %c0_i32_0 = arith.constant 0 : i32
    %c0_i32_1 = arith.constant 0 : i32
    return %c0_i32, %c0_i32_0 : i32, i32
  }
  func.func @transform_3(%arg0: i32) -> (i32, i32, i32) {
    %c0_i32 = arith.constant 0 : i32
    %c0_i32_0 = arith.constant 0 : i32
    %c0_i32_1 = arith.constant 0 : i32
    return %arg0, %c0_i32, %c0_i32_0 : i32, i32, i32
  }
}

</mosaic_0001>

<llo_original>
// kernel: tpu_custom_call.1
$region0: #{tpu_custom_call.1}
  #allocation0 [shape = 'u32[]', space=smem, size = 0x4, offset = 0x4, fixed_abs, tag = 'smem constant byte address 0x4 - core index']
  #allocation1 [shape = 'u32[144,128]{1,0:T(1,128)}', space=vmem, size = 0x12000, scoped, tag = 'internal scratch']
  %s0 = inlined_call_operand.hbm [shape: f32[8,256], index: 0, kind: input, shape index: {}]
  %s1 = inlined_call_operand.vmem [shape: f32[8,36], index: 1, kind: input, shape index: {}]
  %s2 = inlined_call_operand.vmem [shape: f32[8,1], index: 2, kind: input, shape index: {}]
  %s3 = inlined_call_operand.hbm [shape: f32[2,8,256], index: 3, kind: output, shape index: {}]
  %s4 = sld [smem:[#allocation0]]
  $region26: #{tpu_custom_call.1} parent=0
    _
  %s6 = ssub.s32 1, %s4
  %s7 = scalar_select 0, %s6, %s4
  $region1: #{tpu_custom_call.1} parent=0
    #allocation2 [shape = 'u8[8192]{0}', space=vmem, size = 0x2000, scoped, tag = 'input window, operand 0, single buffered']
    #allocation3 [shape = 's32[1]{0}', space=sflag, size = 0x4, scoped, tag = 'scoped memory for tpu_custom_call.1']
    #allocation4 [shape = 's32[1]{0}', space=sflag, size = 0x4, scoped, tag = 'scoped memory for tpu_custom_call.1']
    #allocation5 [shape = 'u8[16384]{0}', space=vmem, size = 0x4000, scoped, tag = 'output window, operand 0, single buffered']
    %8 = vsyncpa [#allocation3], 0
    %9 = vsyncpa [#allocation4], 0
    // Predicated region
    $region2: #{tpu_custom_call.1} parent=1 // pred_check
      _
    $region3: #{tpu_custom_call.1} parent=1 // pred_check_branch
      %11 = sbr.rel (0) target = $region5
    $region4: #{tpu_custom_call.1} parent=1 // pred_region
      %s13 = ssub.s32 256, 256
      %14 = vsyncadd [#allocation3], %s13
      %s16 = sshll.u32 [#allocation2], 4
      %s17 = int_to_ptr.vmem [resolvable:$true] %s16
      %19 = dma.hbm_to_vmem [thread:$0]  %s0, 256, %s17, [#allocation3]
    $region5: #{tpu_custom_call.1} parent=1 // pred_fallthru
      _
    // Predicated region
    $region6: #{tpu_custom_call.1} parent=1 // pred_check
      _
    $region7: #{tpu_custom_call.1} parent=1 // pred_check_branch
      %21 = sbr.rel (0) target = $region9
    $region8: #{tpu_custom_call.1} parent=1 // pred_region
      _
    $region9: #{tpu_custom_call.1} parent=1 // pred_fallthru
      _
    // Predicated region
    $region10: #{tpu_custom_call.1} parent=1 // pred_check
      _
    $region11: #{tpu_custom_call.1} parent=1 // pred_check_branch
      %23 = sbr.rel (0) target = $region13
    $region12: #{tpu_custom_call.1} parent=1 // pred_region
      _
    $region13: #{tpu_custom_call.1} parent=1 // pred_fallthru
      _
    // Predicated region
    $region14: #{tpu_custom_call.1} parent=1 // pred_check
      _
    $region15: #{tpu_custom_call.1} parent=1 // pred_check_branch
      %25 = sbr.rel (0) target = $region17
    $region16: #{tpu_custom_call.1} parent=1 // pred_region
      %26 = dma.done [#allocation3], 256
    $region17: #{tpu_custom_call.1} parent=1 // pred_fallthru
      _
    %v27 = vld [vmem:[#allocation2] sm:$0xff]
    %v28 = vld [vmem:[#allocation2 + $0x8] sm:$0xff]
    %v29 = vlaneseq
    %v30 = vand.u32 %v29, 127
    %v31 = vadd.s32 %v30, 128
    %vm32 = vcmp.lt.s32.totalorder %v30, 0
    %v33 = vsub.s32 0, %v30
    %v34 = vsel %vm32, %v33, %v30
    %v35 = vshrl.u32 %v34, 4
    %v36 = vand.u32 %v34, 15
    %v37 = vsub.s32 0, %v36
    %v38 = vsel %vm32, %v37, %v36
    %vm39 = vcmp.lt.s32.totalorder %v31, 0
    %v40 = vsub.s32 0, %v31
    %v41 = vsel %vm39, %v40, %v31
    %v42 = vshrl.u32 %v41, 4
    %v43 = vand.u32 %v41, 15
    %v44 = vsub.s32 0, %v43
    %v45 = vsel %vm39, %v44, %v43
    %vm46 = vcmp.ne.s32.totalorder %v38, 0
    %vm47 = vcmp.ne.s32.totalorder %v45, 0
    %vm48 = vcmp.lt.s32.totalorder %v38, 0
    %vm49 = vcmp.lt.s32.totalorder %v45, 0
    %vm50 = vmand %vm48, %vm46
    %vm51 = vmand %vm49, %vm47
    %v52 = vadd.s32 %v38, 16
    %v53 = vadd.s32 %v45, 16
    %v54 = vsel %vm50, %v52, %v38
    %v55 = vsel %vm51, %v53, %v45
    %57 = vrot.lane.b32.xlu0 %v28, 17
    %v58 = vpop.permute.xlu0 %57
    %61 = vrot.lane.b32.xlu0 %v27, 17
    %v62 = vpop.permute.xlu0 %61
    %vm63 = vcmask 138240
    %v64 = vsel %vm63, %v62, %v58
    %v67 = vsel %vm63, %v58, %v62
    %v68 = vadd.s32 %v30, 4294967280
    %v69 = vadd.s32 %v31, 4294967280
    %vm70 = vcmp.ge.s32.totalorder %v68, 0
    %vm71 = vcmp.ge.s32.totalorder %v69, 0
    %vm72 = vcmp.lt.s32.totalorder %v68, 256
    %vm73 = vcmp.lt.s32.totalorder %v69, 256
    %vm74 = vmand %vm70, %vm72
    %vm75 = vmand %vm71, %vm73
    %v76 = vadd.s32 %v54, 4294967295
    %v77 = vadd.s32 %v55, 4294967295
    %vm78 = vcmp.ge.s32.totalorder %v76, 0
    %vm79 = vcmp.ge.s32.totalorder %v77, 0
    %vm80 = vmand %vm74, %vm78
    %vm81 = vmand %vm75, %vm79
    %vm82 = vcmp.lt.s32.totalorder %v76, 16
    %vm83 = vcmp.lt.s32.totalorder %v77, 16
    %vm84 = vmand %vm80, %vm82
    %vm85 = vmand %vm81, %vm83
    %v86 = vsel %vm84, 1, 0
    %v87 = vsel %vm85, 1, 0
    %vm88 = vcmp.eq.s32.totalorder %v86, 1
    %vm89 = vcmp.eq.s32.totalorder %v87, 1
    %v90 = vsel %vm88, %v67, 0.0
    %v91 = vsel %vm89, %v64, 0.0
    %92 = vrot.lane.b32.xlu0 %v28, 16
    %v93 = vpop.permute.xlu0 %92
    %95 = vrot.lane.b32.xlu0 %v27, 16
    %v96 = vpop.permute.xlu0 %95
    %vm97 = vcmask 130048
    %v98 = vsel %vm97, %v96, %v93
    %v101 = vsel %vm97, %v93, %v96
    %vm102 = vcmp.ge.s32.totalorder %v54, 0
    %vm103 = vcmp.ge.s32.totalorder %v55, 0
    %vm104 = vmand %vm74, %vm102
    %vm105 = vmand %vm75, %vm103
    %vm106 = vcmp.lt.s32.totalorder %v54, 16
    %vm107 = vcmp.lt.s32.totalorder %v55, 16
    %vm108 = vmand %vm104, %vm106
    %vm109 = vmand %vm105, %vm107
    %v110 = vsel %vm108, 1, 0
    %v111 = vsel %vm109, 1, 0
    %vm112 = vcmp.eq.s32.totalorder %v110, 1
    %vm113 = vcmp.eq.s32.totalorder %v111, 1
    %v114 = vsel %vm112, %v101, 0.0
    %v115 = vsel %vm113, %v98, 0.0
    %116 = vrot.lane.b32.xlu0 %v28, 15
    %v117 = vpop.permute.xlu0 %116
    %119 = vrot.lane.b32.xlu0 %v27, 15
    %v120 = vpop.permute.xlu0 %119
    %vm121 = vcmask 121856
    %v122 = vsel %vm121, %v120, %v117
    %v125 = vsel %vm121, %v117, %v120
    %v126 = vadd.s32 %v54, 1
    %v127 = vadd.s32 %v55, 1
    %vm128 = vcmp.ge.s32.totalorder %v126, 0
    %vm129 = vcmp.ge.s32.totalorder %v127, 0
    %vm130 = vmand %vm74, %vm128
    %vm131 = vmand %vm75, %vm129
    %vm132 = vcmp.lt.s32.totalorder %v126, 16
    %vm133 = vcmp.lt.s32.totalorder %v127, 16
    %vm134 = vmand %vm130, %vm132
    %vm135 = vmand %vm131, %vm133
    %v136 = vsel %vm134, 1, 0
    %v137 = vsel %vm135, 1, 0
    %vm138 = vcmp.eq.s32.totalorder %v136, 1
    %vm139 = vcmp.eq.s32.totalorder %v137, 1
    %v140 = vsel %vm138, %v125, 0.0
    %v141 = vsel %vm139, %v122, 0.0
    %142 = vrot.lane.b32.xlu0 %v28, 1
    %v143 = vpop.permute.xlu0 %142
    %145 = vrot.lane.b32.xlu0 %v27, 1
    %v146 = vpop.permute.xlu0 %145
    %vm147 = vcmask 7168
    %v148 = vsel %vm147, %v146, %v143
    %v151 = vsel %vm147, %v143, %v146
    %vm152 = vcmp.ge.s32.totalorder %v30, 0
    %vm153 = vcmp.ge.s32.totalorder %v31, 0
    %vm154 = vcmp.lt.s32.totalorder %v30, 256
    %vm155 = vcmp.lt.s32.totalorder %v31, 256
    %vm156 = vmand %vm152, %vm154
    %vm157 = vmand %vm153, %vm155
    %vm158 = vmand %vm156, %vm78
    %vm159 = vmand %vm157, %vm79
    %vm160 = vmand %vm158, %vm82
    %vm161 = vmand %vm159, %vm83
    %v162 = vsel %vm160, 1, 0
    %v163 = vsel %vm161, 1, 0
    %vm164 = vcmp.eq.s32.totalorder %v162, 1
    %vm165 = vcmp.eq.s32.totalorder %v163, 1
    %v166 = vsel %vm164, %v151, 0.0
    %v167 = vsel %vm165, %v148, 0.0
    %168 = vrot.lane.b32.xlu0 %v27, 127
    %v169 = vpop.permute.xlu0 %168
    %170 = vrot.lane.b32.xlu0 %v28, 127
    %v171 = vpop.permute.xlu0 %170
    %vm172 = vcmask 1039360
    %v173 = vsel %vm172, %v169, %v171
    %v177 = vsel %vm172, %v171, %v169
    %vm178 = vmand %vm156, %vm128
    %vm179 = vmand %vm157, %vm129
    %vm180 = vmand %vm178, %vm132
    %vm181 = vmand %vm179, %vm133
    %v182 = vsel %vm180, 1, 0
    %v183 = vsel %vm181, 1, 0
    %vm184 = vcmp.eq.s32.totalorder %v182, 1
    %vm185 = vcmp.eq.s32.totalorder %v183, 1
    %v186 = vsel %vm184, %v173, 0.0
    %v187 = vsel %vm185, %v177, 0.0
    %188 = vrot.lane.b32.xlu0 %v27, 113
    %v189 = vpop.permute.xlu0 %188
    %190 = vrot.lane.b32.xlu0 %v28, 113
    %v191 = vpop.permute.xlu0 %190
    %vm192 = vcmask 924672
    %v193 = vsel %vm192, %v189, %v191
    %v197 = vsel %vm192, %v191, %v189
    %v198 = vadd.s32 %v30, 16
    %v199 = vadd.s32 %v31, 16
    %vm200 = vcmp.ge.s32.totalorder %v198, 0
    %vm201 = vcmp.ge.s32.totalorder %v199, 0
    %vm202 = vcmp.lt.s32.totalorder %v198, 256
    %vm203 = vcmp.lt.s32.totalorder %v199, 256
    %vm204 = vmand %vm200, %vm202
    %vm205 = vmand %vm201, %vm203
    %vm206 = vmand %vm204, %vm78
    %vm207 = vmand %vm205, %vm79
    %vm208 = vmand %vm206, %vm82
    %vm209 = vmand %vm207, %vm83
    %v210 = vsel %vm208, 1, 0
    %v211 = vsel %vm209, 1, 0
    %vm212 = vcmp.eq.s32.totalorder %v210, 1
    %vm213 = vcmp.eq.s32.totalorder %v211, 1
    %v214 = vsel %vm212, %v193, 0.0
    %v215 = vsel %vm213, %v197, 0.0
    %216 = vrot.lane.b32.xlu0 %v27, 112
    %v217 = vpop.permute.xlu0 %216
    %218 = vrot.lane.b32.xlu0 %v28, 112
    %v219 = vpop.permute.xlu0 %218
    %vm220 = vcmask 916480
    %v221 = vsel %vm220, %v217, %v219
    %v225 = vsel %vm220, %v219, %v217
    %vm226 = vmand %vm204, %vm102
    %vm227 = vmand %vm205, %vm103
    %vm228 = vmand %vm226, %vm106
    %vm229 = vmand %vm227, %vm107
    %v230 = vsel %vm228, 1, 0
    %v231 = vsel %vm229, 1, 0
    %vm232 = vcmp.eq.s32.totalorder %v230, 1
    %vm233 = vcmp.eq.s32.totalorder %v231, 1
    %v234 = vsel %vm232, %v221, 0.0
    %v235 = vsel %vm233, %v225, 0.0
    %236 = vrot.lane.b32.xlu0 %v27, 111
    %v237 = vpop.permute.xlu0 %236
    %238 = vrot.lane.b32.xlu0 %v28, 111
    %v239 = vpop.permute.xlu0 %238
    %vm240 = vcmask 908288
    %v241 = vsel %vm240, %v237, %v239
    %v245 = vsel %vm240, %v239, %v237
    %vm246 = vmand %vm204, %vm128
    %vm247 = vmand %vm205, %vm129
    %vm248 = vmand %vm246, %vm132
    %vm249 = vmand %vm247, %vm133
    %v250 = vsel %vm248, 1, 0
    %v251 = vsel %vm249, 1, 0
    %vm252 = vcmp.eq.s32.totalorder %v250, 1
    %vm253 = vcmp.eq.s32.totalorder %v251, 1
    %v254 = vsel %vm252, %v241, 0.0
    %v255 = vsel %vm253, %v245, 0.0
    %v256 = vld [vmem:[%s1] sm:$0xff]
    %v257 = vld [vmem:[%s2] sm:$0xff]
    %v260 = vrot.slane %v114, 4
    %v261 = vrot.slane %v115, 4
    %v266 = vrot.slane %v166, 4
    %v267 = vrot.slane %v167, 4
    %v272 = vrot.slane %v186, 4
    %v273 = vrot.slane %v187, 4
    %v278 = vrot.slane %v234, 4
    %v279 = vrot.slane %v235, 4
    %vm282 = vcmask 1043456
    %v283 = vsel %vm282, %v90, %v260
    %v284 = vsel %vm282, %v91, %v261
    %v285 = vsel %vm282, %v140, %v266
    %v286 = vsel %vm282, %v141, %v267
    %v287 = vsel %vm282, %v27, %v272
    %v288 = vsel %vm282, %v28, %v273
    %v289 = vsel %vm282, %v214, %v278
    %v290 = vsel %vm282, %v215, %v279
    %292 = vset.pattern.permute.xlu0 0
    %293 = vperm.xlu0 %292, %v257
    %v294 = vpop.permute.xlu0 %293
    %vm296 = vcmask 293888
    %v298 = vsel %vm296, %v256, 0
    %v301 = vsel %vm282, %v254, 0
    %v304 = vsel %vm282, %v255, 0
    %306 = vmatprep.subr.mxu0 0.0
    %307 = vmatpush1.msra.mxu0 0.0
    %308 = vmatprep.subr.mxu0 0.0
    %309 = vmatpush1.msra.mxu0 0.0
    %310 = vmatprep.subr.mxu0 0.0
    %311 = vmatpush1.msra.mxu0 0.0
    %312 = vmatprep.subr.mxu0 0.0
    %313 = vmatpush1.msra.mxu0 0.0
    %314 = vmatprep.subr.mxu0 0.0
    %315 = vmatpush1.msra.mxu0 0.0
    %316 = vmatprep.subr.mxu0 0.0
    %317 = vmatpush1.msra.mxu0 0.0
    %318 = vmatprep.subr.mxu0 0.0
    %319 = vmatpush1.msra.mxu0 0.0
    %320 = vmatprep.subr.mxu0 0.0
    %321 = vmatpush1.msra.mxu0 0.0
    %322 = vmatprep.subr.mxu0 0.0
    %323 = vmatpush1.msra.mxu0 0.0
    %324 = vmatprep.subr.mxu0 0.0
    %325 = vmatpush1.msra.mxu0 0.0
    %326 = vmatprep.subr.mxu0 0.0
    %327 = vmatpush1.msra.mxu0 0.0
    %328 = vmatprep.subr.mxu0 %v304
    %329 = vmatpush1.msra.mxu0 %v301
    %330 = vmatprep.subr.mxu0 %v290
    %331 = vmatpush1.msra.mxu0 %v289
    %332 = vmatprep.subr.mxu0 %v288
    %333 = vmatpush1.msra.mxu0 %v287
    %334 = vmatprep.subr.mxu0 %v286
    %335 = vmatpush1.msra.mxu0 %v285
    %336 = vmatprep.subr.mxu0 %v284
    %337 = vmatpush1.msra.mxu0 %v283
    %338 = vmatprep.subr.mxu0 0.0
    %339 = vmatpush2.msra.mxu0 0.0
    %340 = vmatprep.subr.mxu0 0.0
    %341 = vmatpush2.msra.mxu0 0.0
    %342 = vmatprep.subr.mxu0 0.0
    %343 = vmatpush2.msra.mxu0 0.0
    %344 = vmatprep.subr.mxu0 0.0
    %345 = vmatpush2.msra.mxu0 0.0
    %346 = vmatprep.subr.mxu0 0.0
    %347 = vmatpush2.msra.mxu0 0.0
    %348 = vmatprep.subr.mxu0 0.0
    %349 = vmatpush2.msra.mxu0 0.0
    %350 = vmatprep.subr.mxu0 0.0
    %351 = vmatpush2.msra.mxu0 0.0
    %352 = vmatprep.subr.mxu0 0.0
    %353 = vmatpush2.msra.mxu0 0.0
    %354 = vmatprep.subr.mxu0 0.0
    %355 = vmatpush2.msra.mxu0 0.0
    %356 = vmatprep.subr.mxu0 0.0
    %357 = vmatpush2.msra.mxu0 0.0
    %358 = vmatprep.subr.mxu0 0.0
    %359 = vmatpush2.msra.mxu0 0.0
    %360 = vmatprep.subr.mxu0 0.0
    %361 = vmatpush2.msra.mxu0 0.0
    %362 = vmatprep.subr.mxu0 0.0
    %363 = vmatpush2.msra.mxu0 0.0
    %364 = vmatprep.subr.mxu0 0.0
    %365 = vmatpush2.msra.mxu0 0.0
    %366 = vmatprep.subr.mxu0 0.0
    %367 = vmatpush2.msra.mxu0 0.0
    %368 = vmatprep.subr.mxu0 0.0
    %369 = vmatpush2.msra.mxu0 0.0
    %370 = vmatprep.mubr.f32.mxu0 0.0
    %371 = vmatmul.mubr.f32.gmra.mxu0 %v298
    %v372 = vpop.f32.mrf.mxu0
    %v373 = vadd.f32 %v294, %v372
    %v374 = vpop.f32.mrf.mxu0
    %v375 = vadd.f32 %v294, %v374
    %376 = vdwg.mxu0
    %v377 = vmul.f32 %v373, 0.5
    %v378 = vmul.f32 %v375, 0.5
    %v379 = vmul.f32 %v373, 0.70710677
    %v380 = vmul.f32 %v375, 0.70710677
    %v381 = vand.u32 2147483647, %v379
    %v382 = vand.u32 2147483647, %v380
    %v383 = vmul.f32 %v381, 0.3275911
    %v384 = vmul.f32 %v382, 0.3275911
    %v385 = vadd.f32 %v383, 1.0
    %v386 = vadd.f32 %v384, 1.0
    %v387 = vrcp.pop %v385
    %v388 = vrcp.pop %v386
    %v389 = vmul.f32 %v385, %v387
    %v390 = vmul.f32 %v386, %v388
    %v391 = vsub.f32 2.0, %v389
    %v392 = vsub.f32 2.0, %v390
    %v393 = vmul.f32 %v387, %v391
    %v394 = vmul.f32 %v388, %v392
    %v395 = vmul.f32 %v393, 1.0614054
    %v396 = vmul.f32 %v394, 1.0614054
    %v397 = vadd.f32 %v395, -1.4531521
    %v398 = vadd.f32 %v396, -1.4531521
    %v399 = vmul.f32 %v397, %v393
    %v400 = vmul.f32 %v398, %v394
    %v401 = vadd.f32 %v399, 1.4214138
    %v402 = vadd.f32 %v400, 1.4214138
    %v403 = vmul.f32 %v401, %v393
    %v404 = vmul.f32 %v402, %v394
    %v405 = vadd.f32 %v403, -0.28449672
    %v406 = vadd.f32 %v404, -0.28449672
    %v407 = vmul.f32 %v405, %v393
    %v408 = vmul.f32 %v406, %v394
    %v409 = vadd.f32 %v407, 0.2548296
    %v410 = vadd.f32 %v408, 0.2548296
    %v411 = vmul.f32 %v409, %v393
    %v412 = vmul.f32 %v410, %v394
    %v413 = vsub.f32 0.0, %v381
    %v414 = vsub.f32 0.0, %v382
    %v415 = vmul.f32 %v413, %v381
    %v416 = vmul.f32 %v414, %v382
    %v417 = vmul.f32 %v415, 1.442695
    %v418 = vpow.pop %v417
    %v419 = vmul.f32 %v416, 1.442695
    %v420 = vpow.pop %v419
    %v421 = vmul.f32 %v411, %v418
    %v422 = vmul.f32 %v412, %v420
    %v423 = vsub.f32 1.0, %v421
    %v424 = vsub.f32 1.0, %v422
    %vm425 = vcmp.ge.f32.partialorder %v379, 0.0
    %vm426 = vcmp.ge.f32.partialorder %v380, 0.0
    %v427 = vsub.f32 0.0, %v423
    %v428 = vsub.f32 0.0, %v424
    %v429 = vsel %vm425, %v423, %v427
    %v430 = vsel %vm426, %v424, %v428
    %v431 = vadd.f32 %v429, 1.0
    %v432 = vadd.f32 %v430, 1.0
    %v433 = vmul.f32 %v377, %v431
    %v434 = vmul.f32 %v378, %v432
    %435 = vst [vmem:[#allocation5] sm:$0xff] %v433
    %436 = vst [vmem:[#allocation5 + $0x8] sm:$0xff] %v434
    %v439 = vrot.slane %v90, 4
    %v440 = vrot.slane %v91, 4
    %v445 = vrot.slane %v140, 4
    %v446 = vrot.slane %v141, 4
    %v449 = vrot.slane %v27, 4
    %v450 = vrot.slane %v28, 4
    %v455 = vrot.slane %v214, 4
    %v456 = vrot.slane %v215, 4
    %v459 = vrot.slane %v254, 4
    %v460 = vrot.slane %v255, 4
    %v461 = vsel %vm282, %v439, %v114
    %v462 = vsel %vm282, %v440, %v115
    %v463 = vsel %vm282, %v445, %v166
    %v464 = vsel %vm282, %v446, %v167
    %v465 = vsel %vm282, %v449, %v186
    %v466 = vsel %vm282, %v450, %v187
    %v467 = vsel %vm282, %v455, %v234
    %v468 = vsel %vm282, %v456, %v235
    %v469 = vsel %vm282, %v459, 0
    %v471 = vsel %vm282, %v460, 0
    %473 = vmatprep.subr.mxu0 0.0
    %474 = vmatpush1.msra.mxu0 0.0
    %475 = vmatprep.subr.mxu0 0.0
    %476 = vmatpush1.msra.mxu0 0.0
    %477 = vmatprep.subr.mxu0 0.0
    %478 = vmatpush1.msra.mxu0 0.0
    %479 = vmatprep.subr.mxu0 0.0
    %480 = vmatpush1.msra.mxu0 0.0
    %481 = vmatprep.subr.mxu0 0.0
    %482 = vmatpush1.msra.mxu0 0.0
    %483 = vmatprep.subr.mxu0 0.0
    %484 = vmatpush1.msra.mxu0 0.0
    %485 = vmatprep.subr.mxu0 0.0
    %486 = vmatpush1.msra.mxu0 0.0
    %487 = vmatprep.subr.mxu0 0.0
    %488 = vmatpush1.msra.mxu0 0.0
    %489 = vmatprep.subr.mxu0 0.0
    %490 = vmatpush1.msra.mxu0 0.0
    %491 = vmatprep.subr.mxu0 0.0
    %492 = vmatpush1.msra.mxu0 0.0
    %493 = vmatprep.subr.mxu0 0.0
    %494 = vmatpush1.msra.mxu0 0.0
    %495 = vmatprep.subr.mxu0 %v471
    %496 = vmatpush1.msra.mxu0 %v469
    %497 = vmatprep.subr.mxu0 %v468
    %498 = vmatpush1.msra.mxu0 %v467
    %499 = vmatprep.subr.mxu0 %v466
    %500 = vmatpush1.msra.mxu0 %v465
    %501 = vmatprep.subr.mxu0 %v464
    %502 = vmatpush1.msra.mxu0 %v463
    %503 = vmatprep.subr.mxu0 %v462
    %504 = vmatpush1.msra.mxu0 %v461
    %505 = vmatprep.subr.mxu0 0.0
    %506 = vmatpush2.msra.mxu0 0.0
    %507 = vmatprep.subr.mxu0 0.0
    %508 = vmatpush2.msra.mxu0 0.0
    %509 = vmatprep.subr.mxu0 0.0
    %510 = vmatpush2.msra.mxu0 0.0
    %511 = vmatprep.subr.mxu0 0.0
    %512 = vmatpush2.msra.mxu0 0.0
    %513 = vmatprep.subr.mxu0 0.0
    %514 = vmatpush2.msra.mxu0 0.0
    %515 = vmatprep.subr.mxu0 0.0
    %516 = vmatpush2.msra.mxu0 0.0
    %517 = vmatprep.subr.mxu0 0.0
    %518 = vmatpush2.msra.mxu0 0.0
    %519 = vmatprep.subr.mxu0 0.0
    %520 = vmatpush2.msra.mxu0 0.0
    %521 = vmatprep.subr.mxu0 0.0
    %522 = vmatpush2.msra.mxu0 0.0
    %523 = vmatprep.subr.mxu0 0.0
    %524 = vmatpush2.msra.mxu0 0.0
    %525 = vmatprep.subr.mxu0 0.0
    %526 = vmatpush2.msra.mxu0 0.0
    %527 = vmatprep.subr.mxu0 0.0
    %528 = vmatpush2.msra.mxu0 0.0
    %529 = vmatprep.subr.mxu0 0.0
    %530 = vmatpush2.msra.mxu0 0.0
    %531 = vmatprep.subr.mxu0 0.0
    %532 = vmatpush2.msra.mxu0 0.0
    %533 = vmatprep.subr.mxu0 0.0
    %534 = vmatpush2.msra.mxu0 0.0
    %535 = vmatprep.subr.mxu0 0.0
    %536 = vmatpush2.msra.mxu0 0.0
    %537 = vmatprep.mubr.f32.mxu0 0.0
    %538 = vmatmul.mubr.f32.gmra.mxu0 %v298
    %v539 = vpop.f32.mrf.mxu0
    %v540 = vadd.f32 %v294, %v539
    %v541 = vpop.f32.mrf.mxu0
    %v542 = vadd.f32 %v294, %v541
    %543 = vdwg.mxu0
    %v544 = vmul.f32 %v540, 0.5
    %v545 = vmul.f32 %v542, 0.5
    %v546 = vmul.f32 %v540, 0.70710677
    %v547 = vmul.f32 %v542, 0.70710677
    %v548 = vand.u32 2147483647, %v546
    %v549 = vand.u32 2147483647, %v547
    %v550 = vmul.f32 %v548, 0.3275911
    %v551 = vmul.f32 %v549, 0.3275911
    %v552 = vadd.f32 %v550, 1.0
    %v553 = vadd.f32 %v551, 1.0
    %v554 = vrcp.pop %v552
    %v555 = vrcp.pop %v553
    %v556 = vmul.f32 %v552, %v554
    %v557 = vmul.f32 %v553, %v555
    %v558 = vsub.f32 2.0, %v556
    %v559 = vsub.f32 2.0, %v557
    %v560 = vmul.f32 %v554, %v558
    %v561 = vmul.f32 %v555, %v559
    %v562 = vmul.f32 %v560, 1.0614054
    %v563 = vmul.f32 %v561, 1.0614054
    %v564 = vadd.f32 %v562, -1.4531521
    %v565 = vadd.f32 %v563, -1.4531521
    %v566 = vmul.f32 %v564, %v560
    %v567 = vmul.f32 %v565, %v561
    %v568 = vadd.f32 %v566, 1.4214138
    %v569 = vadd.f32 %v567, 1.4214138
    %v570 = vmul.f32 %v568, %v560
    %v571 = vmul.f32 %v569, %v561
    %v572 = vadd.f32 %v570, -0.28449672
    %v573 = vadd.f32 %v571, -0.28449672
    %v574 = vmul.f32 %v572, %v560
    %v575 = vmul.f32 %v573, %v561
    %v576 = vadd.f32 %v574, 0.2548296
    %v577 = vadd.f32 %v575, 0.2548296
    %v578 = vmul.f32 %v576, %v560
    %v579 = vmul.f32 %v577, %v561
    %v580 = vsub.f32 0.0, %v548
    %v581 = vsub.f32 0.0, %v549
    %v582 = vmul.f32 %v580, %v548
    %v583 = vmul.f32 %v581, %v549
    %v584 = vmul.f32 %v582, 1.442695
    %v585 = vpow.pop %v584
    %v586 = vmul.f32 %v583, 1.442695
    %v587 = vpow.pop %v586
    %v588 = vmul.f32 %v578, %v585
    %v589 = vmul.f32 %v579, %v587
    %v590 = vsub.f32 1.0, %v588
    %v591 = vsub.f32 1.0, %v589
    %vm592 = vcmp.ge.f32.partialorder %v546, 0.0
    %vm593 = vcmp.ge.f32.partialorder %v547, 0.0
    %v594 = vsub.f32 0.0, %v590
    %v595 = vsub.f32 0.0, %v591
    %v596 = vsel %vm592, %v590, %v594
    %v597 = vsel %vm593, %v591, %v595
    %v598 = vadd.f32 %v596, 1.0
    %v599 = vadd.f32 %v597, 1.0
    %v600 = vmul.f32 %v544, %v598
    %v601 = vmul.f32 %v545, %v599
    %s602 = scalar_lea.vmem [#allocation5], 16
    %603 = vst [vmem:[%s602] sm:$0xff] %v600
    %604 = vst [vmem:[%s602 + $0x8] sm:$0xff] %v601
    // Predicated region
    $region18: #{tpu_custom_call.1} parent=1 // pred_check
      _
    $region19: #{tpu_custom_call.1} parent=1 // pred_check_branch
      %606 = sbr.rel (0) target = $region21
    $region20: #{tpu_custom_call.1} parent=1 // pred_region
      %s608 = ssub.s32 512, 512
      %609 = vsyncadd [#allocation4], %s608
      %s610 = sshll.u32 [#allocation5], 4
      %s611 = int_to_ptr.vmem [resolvable:$true] %s610
      %616 = dma.vmem_to_hbm [thread:$0]  %s611, 512, %s3, [#allocation4], 256, 256, 16
    $region21: #{tpu_custom_call.1} parent=1 // pred_fallthru
      _
    // Predicated region
    $region22: #{tpu_custom_call.1} parent=1 // pred_check
      _
    $region23: #{tpu_custom_call.1} parent=1 // pred_check_branch
      %618 = sbr.rel (0) target = $region25
    $region24: #{tpu_custom_call.1} parent=1 // pred_region
      %619 = dma.done [#allocation4], 512
    $region25: #{tpu_custom_call.1} parent=1 // pred_fallthru
      _
    %620 = vsyncpa [#allocation3], 1
    %621 = vsyncpa [#allocation4], 1

</llo_original>
